<compile_context>
chip_gen: v7x
topology: tpu7x:2x2x1
jax: 0.10.0
libtpu: 0.0.40
codegen_flags: <defaults>
</compile_context>

<pallas_src>
from functools import partial

import jax
import jax.numpy as jnp
from jax.experimental import pallas as pl
from jax.experimental.pallas import tpu as pltpu

EPS = 1e-5


def _round_up(n, m):
    return ((n + m - 1) // m) * m


# ----------------------------------------------------------------------------
# Kernel
# ----------------------------------------------------------------------------
def _linear_model_kernel(x_ref, gamma_ref, beta_ref, w_ref, bias_ref, o_ref, *, eps):
    # x_ref:     (tile_b, D)       input activations (any float dtype)
    # gamma_ref: (1, D)       f32  LayerNorm weight
    # beta_ref:  (1, D)       f32  LayerNorm bias
    # w_ref:     (D, tile_c)  bf16 Linear weight tile (transposed vs. PyTorch [C, D])
    # bias_ref:  (1, tile_c)  f32  Linear bias tile
    # o_ref:     (tile_b, tile_c)
    x = x_ref[...].astype(jnp.float32)

    # Two-pass LayerNorm statistics in f32 (no catastrophic cancellation).
    mean = jnp.mean(x, axis=-1, keepdims=True)
    xc = x - mean
    var = jnp.mean(xc * xc, axis=-1, keepdims=True)     # biased variance (torch.nn.LayerNorm)
    x_norm = xc * jax.lax.rsqrt(var + eps)
    x_norm = x_norm * gamma_ref[...] + beta_ref[...]

    # Dropout with p = 0.0 (the module default) is the identity.
    # TODO(synk): training-mode dropout (p > 0) would use pltpu.prng_seed /
    #             pltpu.prng_random_bits to build the keep-mask in-kernel.

    # Linear: bf16 operands into the MXU, f32 accumulation.
    y = jnp.dot(x_norm.astype(w_ref.dtype), w_ref[...],
                preferred_element_type=jnp.float32)
    o_ref[...] = (y + bias_ref[...]).astype(o_ref.dtype)


# ----------------------------------------------------------------------------
# One-time parameter preprocessing (do NOT call per forward pass)
# ----------------------------------------------------------------------------
def prepare_linear_model_params(gamma, beta, w, bias, *, weight_dtype=jnp.bfloat16):
    """gamma/beta: (D,); w: (D, C) (transposed vs. torch's (C, D)); bias: (C,)."""
    D, C = w.shape
    cp = _round_up(C, 128)                               # lane-dense output columns
    return {
        "gamma": gamma.astype(jnp.float32).reshape(1, D),
        "beta": beta.astype(jnp.float32).reshape(1, D),
        "w": jnp.pad(w, ((0, 0), (0, cp - C))).astype(weight_dtype),
        "bias": jnp.pad(bias.astype(jnp.float32), (0, cp - C)).reshape(1, cp),
        "num_classes": C,
    }


# ----------------------------------------------------------------------------
# Tiling / VMEM heuristics
# ----------------------------------------------------------------------------
def _vmem_capacity_bytes():
    try:
        return int(pltpu.get_tpu_info().vmem_capacity_bytes)
    except Exception:
        return 64 << 20                                   # conservative (v7x per-TC)


def _choose_tiles(B, D, Cp, x_itemsize, out_itemsize, w_itemsize, budget):
    # Class tile: lane-dense; keep the double-buffered weight tile within ~1/3 of budget.
    tile_c = min(Cp, 2048)
    while tile_c > 256 and 2 * D * tile_c * w_itemsize > budget // 3:
        tile_c //= 2
    tile_c = min(Cp, max(128, (tile_c // 128) * 128))

    # Batch tile: fill the remaining budget with double-buffered x / out tiles.
    resident = 2 * D * tile_c * w_itemsize + 2 * (2 * D + tile_c) * 4
    avail = max(budget - resident, 4 << 20)
    per_row = 2 * (D * x_itemsize + tile_c * out_itemsize)
    fit = max(16, int(avail // per_row))
    tile_b = min(fit, 2048, _round_up(B, 16))
    if B > 512:
        # Keep >= 2 grid steps so both v7x TensorCores get work.
        tile_b = min(tile_b, _round_up(pl.cdiv(B, 2), 256))
    if tile_b >= 256:
        tile_b = (tile_b // 256) * 256                    # match the 256x256 MXU M-dim
    else:
        tile_b = max(16, (tile_b // 16) * 16)             # bf16 (16,128) sublane packing
    if tile_b >= B:
        tile_b = B                                        # single full-batch tile (always legal)
    return tile_b, tile_c


# ----------------------------------------------------------------------------
# Forward pass
# ----------------------------------------------------------------------------
def linear_model_forward(x, params, *, tile_b=None, tile_c=None, out_dtype=None):
    """x: (..., D). Returns (..., num_classes)."""
    gamma, beta, w, bias = params["gamma"], params["beta"], params["w"], params["bias"]
    C = params["num_classes"]
    D, Cp = w.shape
    assert x.shape[-1] == D

    lead_shape = x.shape[:-1]
    x2 = x.reshape(-1, D)                                 # collapse leading dims (no copy)
    B = x2.shape[0]
    out_dtype = x.dtype if out_dtype is None else out_dtype

    capacity = _vmem_capacity_bytes()
    budget = max(capacity // 2, 24 << 20)                 # pipelined-buffer budget
    auto_tb, auto_tc = _choose_tiles(B, D, Cp, x2.dtype.itemsize,
                                     jnp.dtype(out_dtype).itemsize,
                                     w.dtype.itemsize, budget)
    if tile_b is None:
        tile_b = auto_tb
    elif tile_b >= B:
        tile_b = B
    else:
        tile_b = max(8, (tile_b // 8) * 8)
    if tile_c is None:
        tile_c = auto_tc
    else:
        tile_c = min(Cp, max(128, (tile_c // 128) * 128))

    grid = (pl.cdiv(B, tile_b), pl.cdiv(Cp, tile_c))

    # Honest VMEM limit: double-buffered x / out / W tiles + small params + headroom.
    vmem_limit = int(
        2 * tile_b * D * x2.dtype.itemsize
        + 2 * tile_b * tile_c * jnp.dtype(out_dtype).itemsize
        + 2 * D * tile_c * w.dtype.itemsize
        + 2 * (2 * D + tile_c) * 4
    ) + (8 << 20)
    vmem_limit = min(vmem_limit, capacity)

    out = pl.pallas_call(
        partial(_linear_model_kernel, eps=EPS),
        out_shape=jax.ShapeDtypeStruct((B, Cp), out_dtype),
        grid=grid,
        in_specs=[
            pl.BlockSpec((tile_b, D), lambda i, j: (i, 0)),   # x: tiled over batch
            pl.BlockSpec((1, D), lambda i, j: (0, 0)),        # gamma
            pl.BlockSpec((1, D), lambda i, j: (0, 0)),        # beta
            pl.BlockSpec((D, tile_c), lambda i, j: (0, j)),   # W: streamed over classes
            pl.BlockSpec((1, tile_c), lambda i, j: (0, j)),   # bias
        ],
        out_specs=pl.BlockSpec((tile_b, tile_c), lambda i, j: (i, j)),
        compiler_params=pltpu.CompilerParams(
            dimension_semantics=("parallel", "parallel"),
            vmem_limit_bytes=vmem_limit,
        ),
    )(x2, gamma, beta, w, bias)

    if Cp != C:
        out = out[:, :C]
    return out.reshape(*lead_shape, C)


# ----------------------------------------------------------------------------
# Pure-JAX reference (matches the PyTorch module's forward)
# ----------------------------------------------------------------------------
def _reference(x, gamma, beta, w, bias):
    mean = jnp.mean(x, axis=-1, keepdims=True)
    var = jnp.mean((x - mean) ** 2, axis=-1, keepdims=True)
    x_norm = (x - mean) / jnp.sqrt(var + EPS) * gamma + beta
    return x_norm @ w + bias


if __name__ == "__main__":
    key = jax.random.PRNGKey(0)

    # ---- Test 1: shapes implied by the module (batch=8, input_dim=32, num_classes=16) ----
    B, INPUT_DIM, NUM_CLASSES = 8, 32, 16
    k_x, k_w, k_b, key = jax.random.split(key, 4)
    x = jax.random.normal(k_x, (B, INPUT_DIM), dtype=jnp.float32)
    gamma = jnp.ones((INPUT_DIM,), jnp.float32)           # torch LayerNorm default init
    beta = jnp.zeros((INPUT_DIM,), jnp.float32)
    bound = 1.0 / (INPUT_DIM ** 0.5)
    w = jax.random.uniform(k_w, (INPUT_DIM, NUM_CLASSES),
                           minval=-bound, maxval=bound, dtype=jnp.float32)
    bias = jax.random.uniform(k_b, (NUM_CLASSES,),
                              minval=-bound, maxval=bound, dtype=jnp.float32)

    params = prepare_linear_model_params(gamma, beta, w, bias)   # one-time preprocessing
    out = jax.block_until_ready(linear_model_forward(x, params))
    ref = _reference(x, gamma, beta, w, bias)
    assert out.shape == (B, NUM_CLASSES)
    assert jnp.allclose(out, ref, atol=2e-2, rtol=2e-2), "mismatch (test 1)"

    # ---- Test 2: non-aligned shapes, partial batch tile, 2 class tiles, column slice ----
    B2, D2, C2 = 40, 96, 200
    k_x2, k_w2, k_b2, k_g2, k_be2, key = jax.random.split(key, 6)
    x2 = jax.random.normal(k_x2, (B2, D2), dtype=jnp.float32)
    gamma2 = 1.0 + 0.1 * jax.random.normal(k_g2, (D2,), dtype=jnp.float32)
    beta2 = 0.1 * jax.random.normal(k_be2, (D2,), dtype=jnp.float32)
    bound2 = 1.0 / (D2 ** 0.5)
    w2 = jax.random.uniform(k_w2, (D2, C2), minval=-bound2, maxval=bound2, dtype=jnp.float32)
    bias2 = jax.random.uniform(k_b2, (C2,), minval=-bound2, maxval=bound2, dtype=jnp.float32)

    params2 = prepare_linear_model_params(gamma2, beta2, w2, bias2)
    out2 = jax.block_until_ready(
        linear_model_forward(x2, params2, tile_b=16, tile_c=128))  # 3 x 2 grid steps
    ref2 = _reference(x2, gamma2, beta2, w2, bias2)
    assert out2.shape == (B2, C2)
    assert jnp.allclose(out2, ref2, atol=2e-2, rtol=2e-2), "mismatch (test 2)"

    print("KERNEL_OK")
</pallas_src>

<mosaic_0001>
module attributes {stable_mosaic.version = 11 : i64} {
  func.func @_linear_model_kernel(%arg0: i32, %arg1: i32, %arg2: memref<8x32xf32, #tpu.memory_space<vmem>>, %arg3: memref<1x32xf32, #tpu.memory_space<vmem>>, %arg4: memref<1x32xf32, #tpu.memory_space<vmem>>, %arg5: memref<32x128xbf16, #tpu.memory_space<vmem>>, %arg6: memref<1x128xf32, #tpu.memory_space<vmem>>, %arg7: memref<8x128xf32, #tpu.memory_space<vmem>>) attributes {dimension_semantics = [#tpu.dimension_semantics<parallel>, #tpu.dimension_semantics<parallel>], iteration_bounds = array<i64: 1, 1>, scalar_prefetch = 0 : i64, scratch_operands = 0 : i64, tpu.core_type = #tpu.core_type<tc>, window_params = [{transform_indices = @transform_0, window_bounds = array<i64: 8, 32>}, {pipeline_mode = #tpu.pipeline_mode<synchronous>, transform_indices = @transform_1, window_bounds = array<i64: 1, 32>}, {pipeline_mode = #tpu.pipeline_mode<synchronous>, transform_indices = @transform_2, window_bounds = array<i64: 1, 32>}, {transform_indices = @transform_3, window_bounds = array<i64: 32, 128>}, {transform_indices = @transform_4, window_bounds = array<i64: 1, 128>}, {transform_indices = @transform_5, window_bounds = array<i64: 8, 128>}]} {
    %c0 = arith.constant 0 : index
    %c0_0 = arith.constant 0 : index
    %0 = vector.load %arg2[%c0, %c0_0] : memref<8x32xf32, #tpu.memory_space<vmem>>, vector<8x32xf32>
    %cst = arith.constant dense<0.000000e+00> : vector<8xf32>
    %1 = vector.multi_reduction <add>, %0, %cst [1] : vector<8x32xf32> to vector<8xf32>
    %2 = vector.shape_cast %1 : vector<8xf32> to vector<8x1xf32>
    %cst_1 = arith.constant 3.200000e+01 : f32
    %3 = vector.broadcast %cst_1 : f32 to vector<8x1xf32>
    %4 = arith.divf %2, %3 : vector<8x1xf32>
    %5 = vector.broadcast %4 : vector<8x1xf32> to vector<8x32xf32>
    %6 = arith.subf %0, %5 : vector<8x32xf32>
    %7 = arith.mulf %6, %6 : vector<8x32xf32>
    %cst_2 = arith.constant dense<0.000000e+00> : vector<8xf32>
    %8 = vector.multi_reduction <add>, %7, %cst_2 [1] : vector<8x32xf32> to vector<8xf32>
    %9 = vector.shape_cast %8 : vector<8xf32> to vector<8x1xf32>
    %cst_3 = arith.constant 3.200000e+01 : f32
    %10 = vector.broadcast %cst_3 : f32 to vector<8x1xf32>
    %11 = arith.divf %9, %10 : vector<8x1xf32>
    %cst_4 = arith.constant 9.99999974E-6 : f32
    %12 = vector.broadcast %cst_4 : f32 to vector<8x1xf32>
    %13 = arith.addf %11, %12 : vector<8x1xf32>
    %14 = math.rsqrt %13 : vector<8x1xf32>
    %15 = vector.broadcast %14 : vector<8x1xf32> to vector<8x32xf32>
    %16 = arith.mulf %6, %15 : vector<8x32xf32>
    %c0_5 = arith.constant 0 : index
    %c0_6 = arith.constant 0 : index
    %17 = vector.load %arg3[%c0_5, %c0_6] : memref<1x32xf32, #tpu.memory_space<vmem>>, vector<1x32xf32>
    %18 = vector.broadcast %17 : vector<1x32xf32> to vector<8x32xf32>
    %19 = arith.mulf %16, %18 : vector<8x32xf32>
    %c0_7 = arith.constant 0 : index
    %c0_8 = arith.constant 0 : index
    %20 = vector.load %arg4[%c0_7, %c0_8] : memref<1x32xf32, #tpu.memory_space<vmem>>, vector<1x32xf32>
    %21 = vector.broadcast %20 : vector<1x32xf32> to vector<8x32xf32>
    %22 = arith.addf %19, %21 : vector<8x32xf32>
    %23 = arith.truncf %22 : vector<8x32xf32> to vector<8x32xbf16>
    %c0_9 = arith.constant 0 : index
    %c0_10 = arith.constant 0 : index
    %24 = vector.load %arg5[%c0_9, %c0_10] : memref<32x128xbf16, #tpu.memory_space<vmem>>, vector<32x128xbf16>
    %cst_11 = arith.constant dense<0.000000e+00> : vector<8x128xf32>
    %25 = tpu.matmul %23, %24, %cst_11 {dimension_numbers = #tpu.dot_dimension_numbers<[1], [0], [0], [1], [0, 0, 1, 1], [], []>} : vector<8x32xbf16>, vector<32x128xbf16>, vector<8x128xf32> -> vector<8x128xf32>
    %c0_12 = arith.constant 0 : index
    %c0_13 = arith.constant 0 : index
    %26 = vector.load %arg6[%c0_12, %c0_13] : memref<1x128xf32, #tpu.memory_space<vmem>>, vector<1x128xf32>
    %27 = vector.broadcast %26 : vector<1x128xf32> to vector<8x128xf32>
    %28 = arith.addf %25, %27 : vector<8x128xf32>
    %c0_14 = arith.constant 0 : index
    %c0_15 = arith.constant 0 : index
    %29 = vector.load %arg7[%c0_14, %c0_15] : memref<8x128xf32, #tpu.memory_space<vmem>>, vector<8x128xf32>
    tpu.vector_store %arg7[%c0_14, %c0_15], %28 {strides = array<i32>} : memref<8x128xf32, #tpu.memory_space<vmem>>, vector<8x128xf32>,
    return
  }
  func.func @transform_0(%arg0: i32, %arg1: i32) -> (i32, i32) {
    %c0_i32 = arith.constant 0 : i32
    %c0_i32_0 = arith.constant 0 : i32
    return %arg0, %c0_i32 : i32, i32
  }
  func.func @transform_1(%arg0: i32, %arg1: i32) -> (i32, i32) {
    %c0_i32 = arith.constant 0 : i32
    %c0_i32_0 = arith.constant 0 : i32
    %c0_i32_1 = arith.constant 0 : i32
    return %c0_i32, %c0_i32_0 : i32, i32
  }
  func.func @transform_2(%arg0: i32, %arg1: i32) -> (i32, i32) {
    %c0_i32 = arith.constant 0 : i32
    %c0_i32_0 = arith.constant 0 : i32
    %c0_i32_1 = arith.constant 0 : i32
    return %c0_i32, %c0_i32_0 : i32, i32
  }
  func.func @transform_3(%arg0: i32, %arg1: i32) -> (i32, i32) {
    %c0_i32 = arith.constant 0 : i32
    %c0_i32_0 = arith.constant 0 : i32
    return %c0_i32, %arg1 : i32, i32
  }
  func.func @transform_4(%arg0: i32, %arg1: i32) -> (i32, i32) {
    %c0_i32 = arith.constant 0 : i32
    %c0_i32_0 = arith.constant 0 : i32
    return %c0_i32, %arg1 : i32, i32
  }
  func.func @transform_5(%arg0: i32, %arg1: i32) -> (i32, i32) {
    %c0_i32 = arith.constant 0 : i32
    return %arg0, %arg1 : i32, i32
  }
}

</mosaic_0001>

<llo_original>
// kernel: tpu_custom_call.1
$region0: #{tpu_custom_call.1}
  #allocation0 [shape = 'u32[]', space=smem, size = 0x4, offset = 0x4, fixed_abs, tag = 'smem constant byte address 0x4 - core index']
  #allocation1 [shape = 'u32[144,128]{1,0:T(1,128)}', space=vmem, size = 0x12000, scoped, tag = 'internal scratch']
  %s0 = inlined_call_operand.hbm [shape: f32[8,32], index: 0, kind: input, shape index: {}]
  %s1 = inlined_call_operand.vmem [shape: f32[1,32], index: 1, kind: input, shape index: {}]
  %s2 = inlined_call_operand.vmem [shape: f32[1,32], index: 2, kind: input, shape index: {}]
  %s3 = inlined_call_operand.hbm [shape: bf16[32,128], index: 3, kind: input, shape index: {}]
  %s4 = inlined_call_operand.vmem [shape: f32[1,128], index: 4, kind: input, shape index: {}]
  %s5 = inlined_call_operand.hbm [shape: f32[8,128], index: 5, kind: output, shape index: {}]
  %s6 = sld [smem:[#allocation0]]
  $region38: #{tpu_custom_call.1} parent=0
    _
  %s8 = ssub.s32 1, %s6
  %s9 = scalar_select 0, %s8, %s6
  $region1: #{tpu_custom_call.1} parent=0
    #allocation2 [shape = 'u8[4096]{0}', space=vmem, size = 0x1000, scoped, tag = 'input window, operand 0, single buffered']
    #allocation3 [shape = 's32[1]{0}', space=sflag, size = 0x4, scoped, tag = 'scoped memory for tpu_custom_call.1']
    #allocation4 [shape = 's32[1]{0}', space=sflag, size = 0x4, scoped, tag = 'scoped memory for tpu_custom_call.1']
    #allocation5 [shape = 'u8[8192]{0}', space=vmem, size = 0x2000, scoped, tag = 'input window, operand 3, single buffered']
    #allocation6 [shape = 's32[1]{0}', space=sflag, size = 0x4, scoped, tag = 'scoped memory for tpu_custom_call.1']
    #allocation7 [shape = 'u8[4096]{0}', space=vmem, size = 0x1000, scoped, tag = 'output window, operand 0, single buffered']
    %10 = vsyncpa [#allocation3], 0
    %11 = vsyncpa [#allocation6], 0
    %12 = vsyncpa [#allocation4], 0
    // Predicated region
    $region2: #{tpu_custom_call.1} parent=1 // pred_check
      _
    $region3: #{tpu_custom_call.1} parent=1 // pred_check_branch
      %14 = sbr.rel (0) target = $region5
    $region4: #{tpu_custom_call.1} parent=1 // pred_region
      %s16 = ssub.s32 128, 128
      %17 = vsyncadd [#allocation3], %s16
      %s19 = sshll.u32 [#allocation2], 4
      %s20 = int_to_ptr.vmem [resolvable:$true] %s19
      %22 = dma.hbm_to_vmem [thread:$0]  %s0, 128, %s20, [#allocation3]
    $region5: #{tpu_custom_call.1} parent=1 // pred_fallthru
      _
    // Predicated region
    $region6: #{tpu_custom_call.1} parent=1 // pred_check
      _
    $region7: #{tpu_custom_call.1} parent=1 // pred_check_branch
      %24 = sbr.rel (0) target = $region9
    $region8: #{tpu_custom_call.1} parent=1 // pred_region
      _
    $region9: #{tpu_custom_call.1} parent=1 // pred_fallthru
      _
    // Predicated region
    $region10: #{tpu_custom_call.1} parent=1 // pred_check
      _
    $region11: #{tpu_custom_call.1} parent=1 // pred_check_branch
      %26 = sbr.rel (0) target = $region13
    $region12: #{tpu_custom_call.1} parent=1 // pred_region
      _
    $region13: #{tpu_custom_call.1} parent=1 // pred_fallthru
      _
    // Predicated region
    $region14: #{tpu_custom_call.1} parent=1 // pred_check
      _
    $region15: #{tpu_custom_call.1} parent=1 // pred_check_branch
      %28 = sbr.rel (0) target = $region17
    $region16: #{tpu_custom_call.1} parent=1 // pred_region
      %s30 = ssub.s32 256, 256
      %31 = vsyncadd [#allocation6], %s30
      %s32 = sshll.u32 [#allocation5], 4
      %s33 = int_to_ptr.vmem [resolvable:$true] %s32
      %38 = dma.hbm_to_vmem [thread:$0]  %s3, 256, %s33, [#allocation6], 64, 64, 4
    $region17: #{tpu_custom_call.1} parent=1 // pred_fallthru
      _
    // Predicated region
    $region18: #{tpu_custom_call.1} parent=1 // pred_check
      _
    $region19: #{tpu_custom_call.1} parent=1 // pred_check_branch
      %40 = sbr.rel (0) target = $region21
    $region20: #{tpu_custom_call.1} parent=1 // pred_region
      _
    $region21: #{tpu_custom_call.1} parent=1 // pred_fallthru
      _
    // Predicated region
    $region22: #{tpu_custom_call.1} parent=1 // pred_check
      _
    $region23: #{tpu_custom_call.1} parent=1 // pred_check_branch
      %42 = sbr.rel (0) target = $region25
    $region24: #{tpu_custom_call.1} parent=1 // pred_region
      %43 = dma.done [#allocation3], 128
    $region25: #{tpu_custom_call.1} parent=1 // pred_fallthru
      _
    // Predicated region
    $region26: #{tpu_custom_call.1} parent=1 // pred_check
      _
    $region27: #{tpu_custom_call.1} parent=1 // pred_check_branch
      %45 = sbr.rel (0) target = $region29
    $region28: #{tpu_custom_call.1} parent=1 // pred_region
      %46 = dma.done [#allocation6], 256
    $region29: #{tpu_custom_call.1} parent=1 // pred_fallthru
      _
    %v48 = vld [vmem:[#allocation2] sm:$0xff]
    %vm49 = vcmask 261120
    %v50 = vsel %vm49, %v48, 0.0
    %51 = vadd.xlane.f32.xlu0 %v50
    %v52 = vpop.xlane.xlu0 %51
    %v53 = vrcp.pop 32.0
    %v54 = vmul.f32 %v52, %v53
    %v55 = vsub.f32 %v48, %v54
    %v56 = vmul.f32 %v55, %v55
    %v57 = vsel %vm49, %v56, 0.0
    %58 = vadd.xlane.f32.xlu0 %v57
    %v59 = vpop.xlane.xlu0 %58
    %v60 = vmul.f32 %v59, %v53
    %v61 = vadd.f32 %v60, 1e-05
    %v62 = vrsqrt.pop %v61
    %v63 = vmul.f32 %v55, %v62
    %v64 = vld [vmem:[%s1] sm:$0x1]
    %v66 = vlaneseq
    %v67 = vshrl.u32 %v66, 7
    %v68 = vsub.s32 0, %v67
    %v69 = vrot.slane %v64, %v68
    %v71 = vmul.f32 %v63, %v69
    %v72 = vld [vmem:[%s2] sm:$0x1]
    %v74 = vlaneseq
    %v75 = vshrl.u32 %v74, 7
    %v76 = vsub.s32 0, %v75
    %v77 = vrot.slane %v72, %v76
    %v79 = vadd.f32 %v71, %v77
    %v80 = vpack.c.bf16 %v79, %v79
    %v81 = vld [vmem:[#allocation5] sm:$0xf]
    %v82 = vld [vmem:[#allocation5 + $0x4] sm:$0xf]
    %v83 = vld [vmem:[#allocation5 + $0x8] sm:$0xf]
    %v84 = vld [vmem:[#allocation5 + $0xc] sm:$0xf]
    %v85 = vld [vmem:[%s4] sm:$0x1]
    %v87 = vlaneseq
    %v88 = vshrl.u32 %v87, 7
    %v89 = vsub.s32 0, %v88
    %v90 = vrot.slane %v85, %v89
    %v96 = vunpack.c.l.b16 %v81
    %v97 = vunpack.c.l.b16 %v82
    %v98 = vunpack.c.l.b16 %v83
    %v99 = vunpack.c.l.b16 %v84
    %v100 = vpack.c.b16 %v97, %v96
    %v101 = vpack.c.b16 %v99, %v98
    %v105 = vsel %vm49, %v80, 0
    %107 = vmatprep.subr.bf16.mxu0 0
    %108 = vmatpush1.bf16.msra.mxu0 %v100
    %109 = vmatprep.subr.bf16.mxu0 0
    %110 = vmatpush1.bf16.msra.mxu0 %v101
    %111 = vmatprep.subr.bf16.mxu0 0
    %112 = vmatpush1.bf16.msra.mxu0 0
    %113 = vmatprep.subr.bf16.mxu0 0
    %114 = vmatpush1.bf16.msra.mxu0 0
    %115 = vmatprep.subr.bf16.mxu0 0
    %116 = vmatpush1.bf16.msra.mxu0 0
    %117 = vmatprep.subr.bf16.mxu0 0
    %118 = vmatpush1.bf16.msra.mxu0 0
    %119 = vmatprep.subr.bf16.mxu0 0
    %120 = vmatpush1.bf16.msra.mxu0 0
    %121 = vmatprep.subr.bf16.mxu0 0
    %122 = vmatpush1.bf16.msra.mxu0 0
    %123 = vmatprep.subr.bf16.mxu0 0
    %124 = vmatpush1.bf16.msra.mxu0 0
    %125 = vmatprep.subr.bf16.mxu0 0
    %126 = vmatpush1.bf16.msra.mxu0 0
    %127 = vmatprep.subr.bf16.mxu0 0
    %128 = vmatpush1.bf16.msra.mxu0 0
    %129 = vmatprep.subr.bf16.mxu0 0
    %130 = vmatpush1.bf16.msra.mxu0 0
    %131 = vmatprep.subr.bf16.mxu0 0
    %132 = vmatpush1.bf16.msra.mxu0 0
    %133 = vmatprep.subr.bf16.mxu0 0
    %134 = vmatpush1.bf16.msra.mxu0 0
    %135 = vmatprep.subr.bf16.mxu0 0
    %136 = vmatpush1.bf16.msra.mxu0 0
    %137 = vmatprep.subr.bf16.mxu0 0
    %138 = vmatpush1.bf16.msra.mxu0 0
    %139 = vmatprep.mubr.bf16.mxu0 0
    %140 = vmatmul.mubr.bf16.gmra.mrb[0].mxu0 %v105
    %v141 = vpop.f32.mrb[0].mxu0
    %v142 = vadd.f32 %v90, %v141
    %v143 = vpop.f32.mrb[0].mxu0
    %v144 = vpop.f32.mrb[0].mxu0
    %v145 = vpop.f32.mrb[0].mxu0
    %146 = vdwg.mxu0
    %147 = vst [vmem:[#allocation7] sm:$0xff] %v142
    // Predicated region
    $region30: #{tpu_custom_call.1} parent=1 // pred_check
      _
    $region31: #{tpu_custom_call.1} parent=1 // pred_check_branch
      %149 = sbr.rel (0) target = $region33
    $region32: #{tpu_custom_call.1} parent=1 // pred_region
      %s151 = ssub.s32 128, 128
      %152 = vsyncadd [#allocation4], %s151
      %s154 = sshll.u32 [#allocation7], 4
      %s155 = int_to_ptr.vmem [resolvable:$true] %s154
      %157 = dma.vmem_to_hbm [thread:$0]  %s155, 128, %s5, [#allocation4]
    $region33: #{tpu_custom_call.1} parent=1 // pred_fallthru
      _
    // Predicated region
    $region34: #{tpu_custom_call.1} parent=1 // pred_check
      _
    $region35: #{tpu_custom_call.1} parent=1 // pred_check_branch
      %159 = sbr.rel (0) target = $region37
    $region36: #{tpu_custom_call.1} parent=1 // pred_region
      %160 = dma.done [#allocation4], 128
    $region37: #{tpu_custom_call.1} parent=1 // pred_fallthru
      _
    %161 = vsyncpa [#allocation3], 1
    %162 = vsyncpa [#allocation6], 1
    %163 = vsyncpa [#allocation4], 1

</llo_original>
